<compile_context>
chip_gen: v6e
topology: v6e:2x2x1
jax: 0.10.0
libtpu: 0.0.40
codegen_flags: <defaults>
</compile_context>

<pallas_src>
import functools

import jax
import jax.numpy as jnp
from jax.experimental import pallas as pl
from jax.experimental.pallas import tpu as pltpu


# ----------------------------------------------------------------------------- helpers
def _round_up(x, m):
    return (x + m - 1) // m * m


def _vmem_capacity_bytes():
    try:
        return int(pltpu.get_tpu_info().vmem_capacity_bytes)
    except Exception:
        return 64 * 1024 * 1024  # conservative fallback (v7x per-TC VMEM)


def _pick_divisible_tile(dim_pad, align, cap):
    """Largest multiple of `align` <= cap that divides dim_pad (dim_pad % align == 0)."""
    t = min(cap, dim_pad)
    t = max(align, (t // align) * align)
    while dim_pad % t != 0:
        t -= align
    return t


def _pick_bn(b_pad, per_row_bytes, fixed_bytes, budget):
    """VMEM-aware batch tile: multiple of 256 dividing b_pad, >=2 steps when B>=512."""
    avail = max(budget - fixed_bytes, 256 * per_row_bytes)
    bn = max(256, (avail // per_row_bytes) // 256 * 256)
    bn = min(bn, 4096, b_pad)
    if b_pad >= 512:                       # v7x megacore: keep >= 2 grid steps
        bn = min(bn, b_pad // 2)
    bn = max(256, (bn // 256) * 256)
    while b_pad % bn != 0:
        bn -= 256
    return int(bn)


def _pad2(a, rows, cols):
    pr, pc = rows - a.shape[0], cols - a.shape[1]
    if pr == 0 and pc == 0:
        return a
    return jnp.pad(a, ((0, pr), (0, pc)))


# ----------------------------------------------------------------------------- kernels
def _make_matvec_kernel(out_cols):
    """Small-O path: natural-layout x, VPU multiply + XLU lane reduce (no MXU)."""

    def kernel(x_ref, w_ref, b_ref, o_ref):
        # x_ref: (bn, K); w_ref: (O, K); b_ref: SMEM (O,) f32; o_ref: (bn, O)
        x = x_ref[...].astype(jnp.float32)
        for j in range(out_cols):                                   # static, O <= 8
            w_row = w_ref[j:j + 1, :].astype(jnp.float32)           # (1, K)
            col = jnp.sum(x * w_row, axis=-1, keepdims=True)        # (bn, 1) XLU reduce
            o_ref[:, j:j + 1] = (col + b_ref[j]).astype(o_ref.dtype)

    return kernel


def _linear_kernel(x_ref, w_ref, b_ref, o_ref, acc_ref):
    """General-O path: out = x @ W on the MXU with f32 accumulator over K tiles."""
    k = pl.program_id(2)

    @pl.when(k == 0)
    def _():
        acc_ref[...] = jnp.zeros_like(acc_ref)

    acc_ref[...] += jnp.dot(x_ref[...], w_ref[...],
                            preferred_element_type=jnp.float32)

    @pl.when(k == pl.num_programs(2) - 1)
    def _():
        o_ref[...] = (acc_ref[...] + b_ref[...]).astype(o_ref.dtype)


# ----------------------------------------------------------------------------- wrapper
@functools.partial(jax.jit, static_argnames=("store_dtype",))
def generator_forward(x, w_t, b, *, store_dtype=None):
    """Generator.forward: out = x @ w_t + b, w_t = weight.T with shape (K, O)."""
    orig_shape = x.shape
    K = orig_shape[-1]
    O = w_t.shape[1]
    x2 = x.reshape(-1, K)
    B = x2.shape[0]
    out_dtype = x.dtype

    # Optional bf16 storage (halves HBM traffic); accumulation stays f32 in-kernel.
    if store_dtype is not None:
        x2 = x2.astype(store_dtype)
        w_t = w_t.astype(store_dtype)

    itemsize = jnp.dtype(x2.dtype).itemsize
    out_isz = jnp.dtype(out_dtype).itemsize
    vmem_cap = _vmem_capacity_bytes()
    budget = int(vmem_cap * 0.70)                       # double-buffered tile budget
    vmem_limit = min(int(vmem_cap * 0.80), 100 * 1024 * 1024)

    B_pad = _round_up(B, 256)
    use_vpu = (O <= 8) and (K <= 4096)

    if use_vpu:
        # ---- small-O path ----------------------------------------------------
        per_row = 2 * K * itemsize + 2 * O * out_isz
        fixed = 2 * O * K * itemsize
        bn = _pick_bn(B_pad, per_row, fixed, budget)
        grid = (B_pad // bn,)

        x_p = _pad2(x2, B_pad, K)
        w_ok = w_t.T                                    # (O, K): tiny, negligible
        b_sm = b.reshape(O).astype(jnp.float32)

        cost = pl.CostEstimate(
            flops=2 * B_pad * K * O, transcendentals=0,
            bytes_accessed=itemsize * (B_pad * K + O * K)
            + out_isz * B_pad * O + 4 * O)

        out_p = pl.pallas_call(
            _make_matvec_kernel(O),
            out_shape=jax.ShapeDtypeStruct((B_pad, O), out_dtype),
            grid=grid,
            in_specs=[
                pl.BlockSpec((bn, K), lambda i: (i, 0)),            # x, natural layout
                pl.BlockSpec((O, K), lambda i: (0, 0)),             # weight rows
                pl.BlockSpec(memory_space=pltpu.MemorySpace.SMEM),  # bias scalars
            ],
            out_specs=pl.BlockSpec((bn, O), lambda i: (i, 0)),
            compiler_params=pltpu.CompilerParams(
                dimension_semantics=("parallel",),
                vmem_limit_bytes=vmem_limit),
            cost_estimate=cost,
        )(x_p, w_ok, b_sm)
        out2 = out_p[:B]
    else:
        # ---- MXU path: out = x @ W, no wrapper transposes ---------------------
        if K > 2048:
            K_pad = _round_up(K, 256)
            tk = _pick_divisible_tile(K_pad, 256, 2048)
        else:
            K_pad, tk = K, K
        if O > 2048:
            O_pad = _round_up(O, 256)
            to = _pick_divisible_tile(O_pad, 256, 2048)
        else:
            O_pad, to = O, O

        fixed = 2 * tk * to * itemsize + 2 * to * 4
        per_row = 2 * tk * itemsize + 2 * to * out_isz + to * 4     # x + out + acc
        bn = _pick_bn(B_pad, per_row, fixed, budget)
        grid = (B_pad // bn, O_pad // to, K_pad // tk)

        x_p = _pad2(x2, B_pad, K_pad)
        w_p = _pad2(w_t, K_pad, O_pad)
        b_p = _pad2(b.reshape(1, O).astype(jnp.float32), 1, O_pad)

        cost = pl.CostEstimate(
            flops=2 * B_pad * K_pad * O_pad, transcendentals=0,
            bytes_accessed=itemsize * (B_pad * K_pad + K_pad * O_pad)
            + out_isz * B_pad * O_pad + 4 * O_pad)

        out_p = pl.pallas_call(
            _linear_kernel,
            out_shape=jax.ShapeDtypeStruct((B_pad, O_pad), out_dtype),
            grid=grid,
            in_specs=[
                pl.BlockSpec((bn, tk), lambda i, j, k: (i, k)),
                pl.BlockSpec((tk, to), lambda i, j, k: (k, j)),
                pl.BlockSpec((1, to), lambda i, j, k: (0, j)),
            ],
            out_specs=pl.BlockSpec((bn, to), lambda i, j, k: (i, j)),
            scratch_shapes=[pltpu.VMEM((bn, to), jnp.float32)],
            compiler_params=pltpu.CompilerParams(
                dimension_semantics=("parallel", "parallel", "arbitrary"),
                vmem_limit_bytes=vmem_limit),
            cost_estimate=cost,
        )(x_p, w_p, b_p)
        out2 = out_p[:B, :O]

    return out2.reshape(*orig_shape[:-1], O)


# ----------------------------------------------------------------------------- params
def init_generator_params(key, input_dim, output_dim=1):
    """Deterministic init mirroring nn.Linear (+1 added to the bias)."""
    kw, kb = jax.random.split(key)
    bound = 1.0 / jnp.sqrt(jnp.float32(input_dim))
    w = jax.random.uniform(kw, (output_dim, input_dim), jnp.float32, -bound, bound)
    b = jax.random.uniform(kb, (output_dim,), jnp.float32, -bound, bound)
    b = b + 1.0                                         # self.layers[0].bias += 1
    return w.T, b                                       # store W.T (K, O) for the kernel


# ----------------------------------------------------------------------------- main
if __name__ == "__main__":
    input_dim = 32
    output_dim = 1
    batch = 8

    key = jax.random.PRNGKey(0)
    kx, kp = jax.random.split(key)

    x = jax.random.normal(kx, (batch, input_dim), jnp.float32)
    w_t, b = init_generator_params(kp, input_dim, output_dim)

    out = generator_forward(x, w_t, b)
    out = jax.block_until_ready(out)

    ref = x @ w_t + b
    assert out.shape == (batch, output_dim)
    assert jnp.allclose(out, ref, atol=1e-5, rtol=1e-5)

    # Also exercise the general (MXU) path once at a small size.
    w_t2, b2 = init_generator_params(jax.random.PRNGKey(1), input_dim, 16)
    out2 = jax.block_until_ready(generator_forward(x, w_t2, b2))
    ref2 = x @ w_t2 + b2
    assert out2.shape == (batch, 16)
    assert jnp.allclose(out2, ref2, atol=1e-5, rtol=1e-5)

    print("KERNEL_OK")
</pallas_src>

<mosaic_0001>
module attributes {stable_mosaic.version = 11 : i64} {
  func.func @kernel(%arg0: i32, %arg1: memref<256x32xf32, #tpu.memory_space<vmem>>, %arg2: memref<1x32xf32, #tpu.memory_space<vmem>>, %arg3: memref<1xf32, #tpu.memory_space<smem>>, %arg4: memref<256x1xf32, #tpu.memory_space<vmem>>) attributes {dimension_semantics = [#tpu.dimension_semantics<parallel>], iteration_bounds = array<i64: 1>, scalar_prefetch = 0 : i64, scratch_operands = 0 : i64, tpu.core_type = #tpu.core_type<tc>, window_params = [{transform_indices = @transform_0, window_bounds = array<i64: 256, 32>}, {pipeline_mode = #tpu.pipeline_mode<synchronous>, transform_indices = @transform_1, window_bounds = array<i64: 1, 32>}, {transform_indices = @transform_2, window_bounds = array<i64: 1>}, {transform_indices = @transform_3, window_bounds = array<i64: 256, 1>}]} {
    %c0 = arith.constant 0 : index
    %c0_0 = arith.constant 0 : index
    %0 = vector.load %arg1[%c0, %c0_0] : memref<256x32xf32, #tpu.memory_space<vmem>>, vector<256x32xf32>
    %c0_1 = arith.constant 0 : index
    %c0_2 = arith.constant 0 : index
    %1 = vector.load %arg2[%c0_1, %c0_2] : memref<1x32xf32, #tpu.memory_space<vmem>>, vector<1x32xf32>
    %2 = vector.broadcast %1 : vector<1x32xf32> to vector<256x32xf32>
    %3 = arith.mulf %0, %2 : vector<256x32xf32>
    %cst = arith.constant dense<0.000000e+00> : vector<256xf32>
    %4 = vector.multi_reduction <add>, %3, %cst [1] : vector<256x32xf32> to vector<256xf32>
    %5 = vector.shape_cast %4 : vector<256xf32> to vector<256x1xf32>
    %c0_3 = arith.constant 0 : index
    %6 = memref.load %arg3[%c0_3] : memref<1xf32, #tpu.memory_space<smem>>
    %7 = vector.broadcast %6 : f32 to vector<256x1xf32>
    %8 = arith.addf %5, %7 : vector<256x1xf32>
    %c0_4 = arith.constant 0 : index
    %c0_5 = arith.constant 0 : index
    %9 = vector.load %arg4[%c0_4, %c0_5] : memref<256x1xf32, #tpu.memory_space<vmem>>, vector<256x1xf32>
    tpu.vector_store %arg4[%c0_4, %c0_5], %8 {strides = array<i32>} : memref<256x1xf32, #tpu.memory_space<vmem>>, vector<256x1xf32>,
    return
  }
  func.func @transform_0(%arg0: i32) -> (i32, i32) {
    %c0_i32 = arith.constant 0 : i32
    %c0_i32_0 = arith.constant 0 : i32
    return %arg0, %c0_i32 : i32, i32
  }
  func.func @transform_1(%arg0: i32) -> (i32, i32) {
    %c0_i32 = arith.constant 0 : i32
    %c0_i32_0 = arith.constant 0 : i32
    %c0_i32_1 = arith.constant 0 : i32
    return %c0_i32, %c0_i32_0 : i32, i32
  }
  func.func @transform_2(%arg0: i32) -> i32 {
    %c0_i32 = arith.constant 0 : i32
    %c0_i32_0 = arith.constant 0 : i32
    return %c0_i32 : i32
  }
  func.func @transform_3(%arg0: i32) -> (i32, i32) {
    %c0_i32 = arith.constant 0 : i32
    %c0_i32_0 = arith.constant 0 : i32
    return %arg0, %c0_i32 : i32, i32
  }
}

</mosaic_0001>

<llo_original>
// kernel: generator_forward.1
$region0: #{generator_forward.1}
  #allocation0 [shape = 'u32[]', space=smem, size = 0x4, offset = 0x4, fixed_abs, tag = 'smem constant byte address 0x4 - core index']
  #allocation1 [shape = 'u32[144,128]{1,0:T(1,128)}', space=vmem, size = 0x12000, scoped, tag = 'internal scratch']
  #allocation2 [shape = 'f32[1]{0:T(128)S(6)}', space=smem, size = 0x200, scoped, tag = 'scoped memory for generator_forward.1']
  %s0 = inlined_call_operand.vmem [shape: f32[256,32], index: 0, kind: input, shape index: {}]
  %s1 = inlined_call_operand.vmem [shape: f32[1,32], index: 1, kind: input, shape index: {}]
  %s2 = inlined_call_operand.<no memory space> [shape: f32[1], index: 2, kind: input, shape index: {}]
  %s3 = inlined_call_operand.vmem [shape: f32[256,1], index: 3, kind: output, shape index: {}]
  %s4 = sld [smem:[#allocation0]]
  $region22: #{generator_forward.1} parent=0
    _
  %s6 = ssub.s32 1, %s4
  %s7 = scalar_select 0, %s6, %s4
  %8 = sst [smem:[#allocation2]] %s2
  // Predicated region
  $region2: #{generator_forward.1} parent=0 // pred_check
    _
  $region3: #{generator_forward.1} parent=0 // pred_check_branch
    %10 = sbr.rel (0) target = $region5
  $region4: #{generator_forward.1} parent=0 // pred_region
    _
  $region5: #{generator_forward.1} parent=0 // pred_fallthru
    _
  // Predicated region
  $region6: #{generator_forward.1} parent=0 // pred_check
    _
  $region7: #{generator_forward.1} parent=0 // pred_check_branch
    %12 = sbr.rel (0) target = $region9
  $region8: #{generator_forward.1} parent=0 // pred_region
    _
  $region9: #{generator_forward.1} parent=0 // pred_fallthru
    _
  // Predicated region
  $region10: #{generator_forward.1} parent=0 // pred_check
    _
  $region11: #{generator_forward.1} parent=0 // pred_check_branch
    %14 = sbr.rel (0) target = $region13
  $region12: #{generator_forward.1} parent=0 // pred_region
    _
  $region13: #{generator_forward.1} parent=0 // pred_fallthru
    _
  %v15 = vld [vmem:[%s0] sm:$0xff]
  %v16 = vld [vmem:[%s0 + $0x8] sm:$0xff]
  %v17 = vld [vmem:[%s0 + $0x10] sm:$0xff]
  %v18 = vld [vmem:[%s0 + $0x18] sm:$0xff]
  %v19 = vld [vmem:[%s0 + $0x20] sm:$0xff]
  %v20 = vld [vmem:[%s0 + $0x28] sm:$0xff]
  %v21 = vld [vmem:[%s0 + $0x30] sm:$0xff]
  %v22 = vld [vmem:[%s0 + $0x38] sm:$0xff]
  %v23 = vld [vmem:[%s0 + $0x40] sm:$0xff]
  %v24 = vld [vmem:[%s0 + $0x48] sm:$0xff]
  %v25 = vld [vmem:[%s0 + $0x50] sm:$0xff]
  %v26 = vld [vmem:[%s0 + $0x58] sm:$0xff]
  %v27 = vld [vmem:[%s0 + $0x60] sm:$0xff]
  %v28 = vld [vmem:[%s0 + $0x68] sm:$0xff]
  %v29 = vld [vmem:[%s0 + $0x70] sm:$0xff]
  %v30 = vld [vmem:[%s0 + $0x78] sm:$0xff]
  %v31 = vld [vmem:[%s0 + $0x80] sm:$0xff]
  %v32 = vld [vmem:[%s0 + $0x88] sm:$0xff]
  %v33 = vld [vmem:[%s0 + $0x90] sm:$0xff]
  %v34 = vld [vmem:[%s0 + $0x98] sm:$0xff]
  %v35 = vld [vmem:[%s0 + $0xa0] sm:$0xff]
  %v36 = vld [vmem:[%s0 + $0xa8] sm:$0xff]
  %v37 = vld [vmem:[%s0 + $0xb0] sm:$0xff]
  %v38 = vld [vmem:[%s0 + $0xb8] sm:$0xff]
  %v39 = vld [vmem:[%s0 + $0xc0] sm:$0xff]
  %v40 = vld [vmem:[%s0 + $0xc8] sm:$0xff]
  %v41 = vld [vmem:[%s0 + $0xd0] sm:$0xff]
  %v42 = vld [vmem:[%s0 + $0xd8] sm:$0xff]
  %v43 = vld [vmem:[%s0 + $0xe0] sm:$0xff]
  %v44 = vld [vmem:[%s0 + $0xe8] sm:$0xff]
  %v45 = vld [vmem:[%s0 + $0xf0] sm:$0xff]
  %v46 = vld [vmem:[%s0 + $0xf8] sm:$0xff]
  %v47 = vld [vmem:[%s1] sm:$0x1]
  %v49 = vlaneseq
  %v50 = vshrl.u32 %v49, 7
  %v51 = vsub.s32 0, %v50
  %v52 = vrot.slane %v47, %v51
  %v54 = vmul.f32 %v15, %v52
  %v55 = vmul.f32 %v16, %v52
  %v56 = vmul.f32 %v17, %v52
  %v57 = vmul.f32 %v18, %v52
  %v58 = vmul.f32 %v19, %v52
  %v59 = vmul.f32 %v20, %v52
  %v60 = vmul.f32 %v21, %v52
  %v61 = vmul.f32 %v22, %v52
  %v62 = vmul.f32 %v23, %v52
  %v63 = vmul.f32 %v24, %v52
  %v64 = vmul.f32 %v25, %v52
  %v65 = vmul.f32 %v26, %v52
  %v66 = vmul.f32 %v27, %v52
  %v67 = vmul.f32 %v28, %v52
  %v68 = vmul.f32 %v29, %v52
  %v69 = vmul.f32 %v30, %v52
  %v70 = vmul.f32 %v31, %v52
  %v71 = vmul.f32 %v32, %v52
  %v72 = vmul.f32 %v33, %v52
  %v73 = vmul.f32 %v34, %v52
  %v74 = vmul.f32 %v35, %v52
  %v75 = vmul.f32 %v36, %v52
  %v76 = vmul.f32 %v37, %v52
  %v77 = vmul.f32 %v38, %v52
  %v78 = vmul.f32 %v39, %v52
  %v79 = vmul.f32 %v40, %v52
  %v80 = vmul.f32 %v41, %v52
  %v81 = vmul.f32 %v42, %v52
  %v82 = vmul.f32 %v43, %v52
  %v83 = vmul.f32 %v44, %v52
  %v84 = vmul.f32 %v45, %v52
  %v85 = vmul.f32 %v46, %v52
  %vm86 = vcmask 261120
  %v87 = vsel %vm86, %v54, 0.0
  %88 = vadd.xlane.f32.xlu0 %v87
  %v89 = vpop.xlane.xlu0 %88
  %v90 = vsel %vm86, %v55, 0.0
  %91 = vadd.xlane.f32.xlu0 %v90
  %v92 = vpop.xlane.xlu0 %91
  %v93 = vsel %vm86, %v56, 0.0
  %94 = vadd.xlane.f32.xlu0 %v93
  %v95 = vpop.xlane.xlu0 %94
  %v96 = vsel %vm86, %v57, 0.0
  %97 = vadd.xlane.f32.xlu0 %v96
  %v98 = vpop.xlane.xlu0 %97
  %v99 = vsel %vm86, %v58, 0.0
  %100 = vadd.xlane.f32.xlu0 %v99
  %v101 = vpop.xlane.xlu0 %100
  %v102 = vsel %vm86, %v59, 0.0
  %103 = vadd.xlane.f32.xlu0 %v102
  %v104 = vpop.xlane.xlu0 %103
  %v105 = vsel %vm86, %v60, 0.0
  %106 = vadd.xlane.f32.xlu0 %v105
  %v107 = vpop.xlane.xlu0 %106
  %v108 = vsel %vm86, %v61, 0.0
  %109 = vadd.xlane.f32.xlu0 %v108
  %v110 = vpop.xlane.xlu0 %109
  %v111 = vsel %vm86, %v62, 0.0
  %112 = vadd.xlane.f32.xlu0 %v111
  %v113 = vpop.xlane.xlu0 %112
  %v114 = vsel %vm86, %v63, 0.0
  %115 = vadd.xlane.f32.xlu0 %v114
  %v116 = vpop.xlane.xlu0 %115
  %v117 = vsel %vm86, %v64, 0.0
  %118 = vadd.xlane.f32.xlu0 %v117
  %v119 = vpop.xlane.xlu0 %118
  %v120 = vsel %vm86, %v65, 0.0
  %121 = vadd.xlane.f32.xlu0 %v120
  %v122 = vpop.xlane.xlu0 %121
  %v123 = vsel %vm86, %v66, 0.0
  %124 = vadd.xlane.f32.xlu0 %v123
  %v125 = vpop.xlane.xlu0 %124
  %v126 = vsel %vm86, %v67, 0.0
  %127 = vadd.xlane.f32.xlu0 %v126
  %v128 = vpop.xlane.xlu0 %127
  %v129 = vsel %vm86, %v68, 0.0
  %130 = vadd.xlane.f32.xlu0 %v129
  %v131 = vpop.xlane.xlu0 %130
  %v132 = vsel %vm86, %v69, 0.0
  %133 = vadd.xlane.f32.xlu0 %v132
  %v134 = vpop.xlane.xlu0 %133
  %v135 = vsel %vm86, %v70, 0.0
  %136 = vadd.xlane.f32.xlu0 %v135
  %v137 = vpop.xlane.xlu0 %136
  %v138 = vsel %vm86, %v71, 0.0
  %139 = vadd.xlane.f32.xlu0 %v138
  %v140 = vpop.xlane.xlu0 %139
  %v141 = vsel %vm86, %v72, 0.0
  %142 = vadd.xlane.f32.xlu0 %v141
  %v143 = vpop.xlane.xlu0 %142
  %v144 = vsel %vm86, %v73, 0.0
  %145 = vadd.xlane.f32.xlu0 %v144
  %v146 = vpop.xlane.xlu0 %145
  %v147 = vsel %vm86, %v74, 0.0
  %148 = vadd.xlane.f32.xlu0 %v147
  %v149 = vpop.xlane.xlu0 %148
  %v150 = vsel %vm86, %v75, 0.0
  %151 = vadd.xlane.f32.xlu0 %v150
  %v152 = vpop.xlane.xlu0 %151
  %v153 = vsel %vm86, %v76, 0.0
  %154 = vadd.xlane.f32.xlu0 %v153
  %v155 = vpop.xlane.xlu0 %154
  %v156 = vsel %vm86, %v77, 0.0
  %157 = vadd.xlane.f32.xlu0 %v156
  %v158 = vpop.xlane.xlu0 %157
  %v159 = vsel %vm86, %v78, 0.0
  %160 = vadd.xlane.f32.xlu0 %v159
  %v161 = vpop.xlane.xlu0 %160
  %v162 = vsel %vm86, %v79, 0.0
  %163 = vadd.xlane.f32.xlu0 %v162
  %v164 = vpop.xlane.xlu0 %163
  %v165 = vsel %vm86, %v80, 0.0
  %166 = vadd.xlane.f32.xlu0 %v165
  %v167 = vpop.xlane.xlu0 %166
  %v168 = vsel %vm86, %v81, 0.0
  %169 = vadd.xlane.f32.xlu0 %v168
  %v170 = vpop.xlane.xlu0 %169
  %v171 = vsel %vm86, %v82, 0.0
  %172 = vadd.xlane.f32.xlu0 %v171
  %v173 = vpop.xlane.xlu0 %172
  %v174 = vsel %vm86, %v83, 0.0
  %175 = vadd.xlane.f32.xlu0 %v174
  %v176 = vpop.xlane.xlu0 %175
  %v177 = vsel %vm86, %v84, 0.0
  %178 = vadd.xlane.f32.xlu0 %v177
  %v179 = vpop.xlane.xlu0 %178
  %v180 = vsel %vm86, %v85, 0.0
  %181 = vadd.xlane.f32.xlu0 %v180
  %v182 = vpop.xlane.xlu0 %181
  %s183 = sld [smem:[#allocation2]]
  %v184 = vstv %s183
  %v185 = vadd.f32 %v89, %v184
  %v186 = vadd.f32 %v92, %v184
  %v187 = vadd.f32 %v95, %v184
  %v188 = vadd.f32 %v98, %v184
  %v189 = vadd.f32 %v101, %v184
  %v190 = vadd.f32 %v104, %v184
  %v191 = vadd.f32 %v107, %v184
  %v192 = vadd.f32 %v110, %v184
  %v193 = vadd.f32 %v113, %v184
  %v194 = vadd.f32 %v116, %v184
  %v195 = vadd.f32 %v119, %v184
  %v196 = vadd.f32 %v122, %v184
  %v197 = vadd.f32 %v125, %v184
  %v198 = vadd.f32 %v128, %v184
  %v199 = vadd.f32 %v131, %v184
  %v200 = vadd.f32 %v134, %v184
  %v201 = vadd.f32 %v137, %v184
  %v202 = vadd.f32 %v140, %v184
  %v203 = vadd.f32 %v143, %v184
  %v204 = vadd.f32 %v146, %v184
  %v205 = vadd.f32 %v149, %v184
  %v206 = vadd.f32 %v152, %v184
  %v207 = vadd.f32 %v155, %v184
  %v208 = vadd.f32 %v158, %v184
  %v209 = vadd.f32 %v161, %v184
  %v210 = vadd.f32 %v164, %v184
  %v211 = vadd.f32 %v167, %v184
  %v212 = vadd.f32 %v170, %v184
  %v213 = vadd.f32 %v173, %v184
  %v214 = vadd.f32 %v176, %v184
  %v215 = vadd.f32 %v179, %v184
  %v216 = vadd.f32 %v182, %v184
  %vm217 = vcmask 7168
  %218 = vst.msk [vmem:[%s3] sm:$0xff] %vm217, %v185
  %219 = vst.msk [vmem:[%s3 + $0x8] sm:$0xff] %vm217, %v186
  %220 = vst.msk [vmem:[%s3 + $0x10] sm:$0xff] %vm217, %v187
  %221 = vst.msk [vmem:[%s3 + $0x18] sm:$0xff] %vm217, %v188
  %222 = vst.msk [vmem:[%s3 + $0x20] sm:$0xff] %vm217, %v189
  %223 = vst.msk [vmem:[%s3 + $0x28] sm:$0xff] %vm217, %v190
  %224 = vst.msk [vmem:[%s3 + $0x30] sm:$0xff] %vm217, %v191
  %225 = vst.msk [vmem:[%s3 + $0x38] sm:$0xff] %vm217, %v192
  %226 = vst.msk [vmem:[%s3 + $0x40] sm:$0xff] %vm217, %v193
  %227 = vst.msk [vmem:[%s3 + $0x48] sm:$0xff] %vm217, %v194
  %228 = vst.msk [vmem:[%s3 + $0x50] sm:$0xff] %vm217, %v195
  %229 = vst.msk [vmem:[%s3 + $0x58] sm:$0xff] %vm217, %v196
  %230 = vst.msk [vmem:[%s3 + $0x60] sm:$0xff] %vm217, %v197
  %231 = vst.msk [vmem:[%s3 + $0x68] sm:$0xff] %vm217, %v198
  %232 = vst.msk [vmem:[%s3 + $0x70] sm:$0xff] %vm217, %v199
  %233 = vst.msk [vmem:[%s3 + $0x78] sm:$0xff] %vm217, %v200
  %234 = vst.msk [vmem:[%s3 + $0x80] sm:$0xff] %vm217, %v201
  %235 = vst.msk [vmem:[%s3 + $0x88] sm:$0xff] %vm217, %v202
  %236 = vst.msk [vmem:[%s3 + $0x90] sm:$0xff] %vm217, %v203
  %237 = vst.msk [vmem:[%s3 + $0x98] sm:$0xff] %vm217, %v204
  %238 = vst.msk [vmem:[%s3 + $0xa0] sm:$0xff] %vm217, %v205
  %239 = vst.msk [vmem:[%s3 + $0xa8] sm:$0xff] %vm217, %v206
  %240 = vst.msk [vmem:[%s3 + $0xb0] sm:$0xff] %vm217, %v207
  %241 = vst.msk [vmem:[%s3 + $0xb8] sm:$0xff] %vm217, %v208
  %242 = vst.msk [vmem:[%s3 + $0xc0] sm:$0xff] %vm217, %v209
  %243 = vst.msk [vmem:[%s3 + $0xc8] sm:$0xff] %vm217, %v210
  %244 = vst.msk [vmem:[%s3 + $0xd0] sm:$0xff] %vm217, %v211
  %245 = vst.msk [vmem:[%s3 + $0xd8] sm:$0xff] %vm217, %v212
  %246 = vst.msk [vmem:[%s3 + $0xe0] sm:$0xff] %vm217, %v213
  %247 = vst.msk [vmem:[%s3 + $0xe8] sm:$0xff] %vm217, %v214
  %248 = vst.msk [vmem:[%s3 + $0xf0] sm:$0xff] %vm217, %v215
  %249 = vst.msk [vmem:[%s3 + $0xf8] sm:$0xff] %vm217, %v216
  // Predicated region
  $region14: #{generator_forward.1} parent=0 // pred_check
    _
  $region15: #{generator_forward.1} parent=0 // pred_check_branch
    %251 = sbr.rel (0) target = $region17
  $region16: #{generator_forward.1} parent=0 // pred_region
    _
  $region17: #{generator_forward.1} parent=0 // pred_fallthru
    _
  // Predicated region
  $region18: #{generator_forward.1} parent=0 // pred_check
    _
  $region19: #{generator_forward.1} parent=0 // pred_check_branch
    %253 = sbr.rel (0) target = $region21
  $region20: #{generator_forward.1} parent=0 // pred_region
    _
  $region21: #{generator_forward.1} parent=0 // pred_fallthru
    _

</llo_original>
